<compile_context>
chip_gen: v7x
topology: tpu7x:2x2x1
jax: 0.10.0
libtpu: 0.0.40
codegen_flags: <defaults>
</compile_context>

<pallas_src>
import functools

import jax
import jax.numpy as jnp
from jax.experimental import pallas as pl
from jax.experimental.pallas import tpu as pltpu


def _focal_partial_kernel(logits_ref, target_ref, out_ref, *,
                          n_total, tile_n, epsilon):
    """One grid step: (tile_n, C) rows -> lane-dense (1, 128) partial NLL sum."""
    i = pl.program_id(0)

    x = logits_ref[...].astype(jnp.float32)                     # (tn, C) f32 math
    tn, c = x.shape

    # Numerically-stable log-sum-exp along the class (lane) axis.
    m = jnp.max(x, axis=1, keepdims=True)                       # (tn, 1)  XLU
    shifted = x - m
    sum_exp = jnp.sum(jnp.exp(shifted), axis=1, keepdims=True)  # (tn, 1)  EUP+XLU

    # One-hot pick of the target column (no gather on TPU VPU). Since
    # sum(onehot) == 1 per row:  nll = log(sum_exp + eps) - shifted[target],
    # so the full (tn, C) logprob tensor is never materialized.
    cls_idx = jax.lax.broadcasted_iota(jnp.int32, (tn, c), 1)
    onehot = (cls_idx == target_ref[...]).astype(jnp.float32)   # (tn, C)
    picked = jnp.sum(onehot * shifted, axis=1, keepdims=True)   # (tn, 1)
    per_row_nll = jnp.log(sum_exp + epsilon) - picked           # (tn, 1)

    # Mask rows past N (ragged last tile reads unspecified VMEM padding).
    row_idx = i * tile_n + jax.lax.broadcasted_iota(jnp.int32, (tn, 1), 0)
    per_row_nll = jnp.where(row_idx < n_total, per_row_nll, 0.0)

    partial = jnp.sum(per_row_nll, axis=0, keepdims=True)       # (1, 1)
    out_ref[...] = jnp.broadcast_to(partial, out_ref.shape)     # lane-dense (1, 128)


def _finalize_kernel(partials_ref, out_ref, *, n_total, gamma):
    """Sum per-tile partials, take the mean, apply the focal modulation."""
    p = partials_ref[...]                        # (num_tiles, 128); lanes identical
    total = jnp.sum(p[:, 0:1])                   # lane-0 column over all tiles
    mean_loss = total * jnp.float32(1.0 / n_total)
    loss_exp = jnp.exp(-mean_loss)
    base = 1.0 - loss_exp
    if float(gamma).is_integer() and 0 <= int(gamma) <= 8:
        # Integer gamma (common case): repeated multiply, no transcendental pow,
        # and no NaN risk if `base` rounds slightly negative near loss == 0.
        mod = jnp.float32(1.0)
        for _ in range(int(gamma)):
            mod = mod * base
    else:
        mod = jnp.power(base, jnp.float32(gamma))
    out_ref[0, 0] = mod * mean_loss


def focal_loss(logits, target, *, gamma=2.0, epsilon=1e-8, tile_n=None):
    """logits: (N, C) float32/bfloat16; target: (N,) int class ids. Returns f32 scalar."""
    n, c = logits.shape
    itemsize = jnp.dtype(logits.dtype).itemsize
    sub = 16 if itemsize < 4 else 8             # min sublane tiling (bf16 packs 16)

    if tile_n is None:
        # ~2 MiB logits tile => ~4 MiB double-buffered per operand: big enough to
        # amortize per-step overhead (~0.35 us/step), small enough for v7x VMEM.
        target_bytes = 2 << 20
        tile_n = max(sub, (target_bytes // max(1, c * itemsize)) // sub * sub)
    if tile_n >= n:
        tile_n = n                              # full-dim block (exempt from /8 rule)
    else:
        tile_n = max(sub, (tile_n // sub) * sub)

    num_tiles = pl.cdiv(n, tile_n)
    target2d = target.astype(jnp.int32).reshape(n, 1)

    partial_kernel = functools.partial(
        _focal_partial_kernel, n_total=n, tile_n=tile_n, epsilon=float(epsilon))

    partials = pl.pallas_call(
        partial_kernel,
        out_shape=jax.ShapeDtypeStruct((num_tiles, 128), jnp.float32),
        grid_spec=pltpu.PrefetchScalarGridSpec(
            num_scalar_prefetch=0,
            grid=(num_tiles,),
            in_specs=[
                pl.BlockSpec((tile_n, c), lambda i: (i, 0)),
                pl.BlockSpec((tile_n, 1), lambda i: (i, 0)),
            ],
            out_specs=pl.BlockSpec((1, 128), lambda i: (i, 0)),
        ),
        compiler_params=pltpu.CompilerParams(
            dimension_semantics=("parallel",),      # independent tiles; megacore-ok
            vmem_limit_bytes=32 << 20),
        cost_estimate=pl.CostEstimate(
            flops=6 * n * c,
            transcendentals=n * c + n,
            bytes_accessed=n * c * itemsize + n * 4 + num_tiles * 128 * 4),
    )(logits, target2d)

    finalize = functools.partial(_finalize_kernel, n_total=n, gamma=float(gamma))
    loss = pl.pallas_call(
        finalize,
        out_shape=jax.ShapeDtypeStruct((1, 1), jnp.float32),
        grid=(1,),
        in_specs=[pl.BlockSpec((num_tiles, 128), lambda i: (0, 0))],
        out_specs=pl.BlockSpec((1, 1), lambda i: (0, 0)),
    )(partials)
    return loss[0, 0]


# TODO(synk): the ModelParallel (vocab-sharded) path of the original module
# (correct_mask + distributed nll_loss) is not implemented; this is the
# single-replica forward only.


if __name__ == "__main__":
    key = jax.random.PRNGKey(0)
    k1, k2, k3, k4 = jax.random.split(key, 4)

    gamma, epsilon = 2.0, 1e-8

    def ref_focal(logits, target):
        x = logits.astype(jnp.float32)
        x = x - jnp.max(x, axis=1, keepdims=True)
        logprob = x - jnp.log(jnp.sum(jnp.exp(x), axis=1, keepdims=True) + epsilon)
        nll = -jnp.mean(logprob[jnp.arange(x.shape[0]), target])
        return (1.0 - jnp.exp(-nll)) ** gamma * nll

    # Case 1: small f32 problem, single tile.
    N1, C1 = 8, 32
    logits1 = jax.random.normal(k1, (N1, C1), dtype=jnp.float32)
    target1 = jax.random.randint(k2, (N1,), 0, C1, dtype=jnp.int32)
    out1 = jax.block_until_ready(
        focal_loss(logits1, target1, gamma=gamma, epsilon=epsilon))
    ref1 = ref_focal(logits1, target1)
    assert jnp.allclose(out1, ref1, rtol=1e-5, atol=1e-6), (out1, ref1)

    # Case 2: bf16 logits, multiple tiles, ragged last tile (masking path).
    N2, C2 = 50, 128
    logits2 = jax.random.normal(k3, (N2, C2), dtype=jnp.float32).astype(jnp.bfloat16)
    target2 = jax.random.randint(k4, (N2,), 0, C2, dtype=jnp.int32)
    out2 = jax.block_until_ready(
        focal_loss(logits2, target2, gamma=gamma, epsilon=epsilon, tile_n=16))
    ref2 = ref_focal(logits2, target2)
    assert jnp.allclose(out2, ref2, rtol=2e-5, atol=1e-5), (out2, ref2)

    print("KERNEL_OK")
</pallas_src>

<mosaic_0001>
module attributes {stable_mosaic.version = 11 : i64} {
  func.func @_focal_partial_kernel(%arg0: i32, %arg1: memref<8x32xf32, #tpu.memory_space<vmem>>, %arg2: memref<8x1xi32, #tpu.memory_space<vmem>>, %arg3: memref<1x128xf32, #tpu.memory_space<vmem>>) attributes {dimension_semantics = [#tpu.dimension_semantics<parallel>], iteration_bounds = array<i64: 1>, scalar_prefetch = 0 : i64, scratch_operands = 0 : i64, tpu.core_type = #tpu.core_type<tc>, window_params = [{transform_indices = @transform_0, window_bounds = array<i64: 8, 32>}, {transform_indices = @transform_1, window_bounds = array<i64: 8, 1>}, {transform_indices = @transform_2, window_bounds = array<i64: 1, 128>}]} {
    %c0 = arith.constant 0 : index
    %c0_0 = arith.constant 0 : index
    %0 = vector.load %arg1[%c0, %c0_0] : memref<8x32xf32, #tpu.memory_space<vmem>>, vector<8x32xf32>
    %cst = arith.constant dense<0xFF800000> : vector<8xf32>
    %1 = vector.multi_reduction <maximumf>, %0, %cst [1] : vector<8x32xf32> to vector<8xf32>
    %2 = vector.shape_cast %1 : vector<8xf32> to vector<8x1xf32>
    %3 = vector.broadcast %2 : vector<8x1xf32> to vector<8x32xf32>
    %4 = arith.subf %0, %3 : vector<8x32xf32>
    %5 = math.exp %4 : vector<8x32xf32>
    %cst_1 = arith.constant dense<0.000000e+00> : vector<8xf32>
    %6 = vector.multi_reduction <add>, %5, %cst_1 [1] : vector<8x32xf32> to vector<8xf32>
    %7 = vector.shape_cast %6 : vector<8xf32> to vector<8x1xf32>
    %8 = tpu.iota {dimensions = array<i32: 1>} : vector<8x32xi32>
    %c0_2 = arith.constant 0 : index
    %c0_3 = arith.constant 0 : index
    %9 = vector.load %arg2[%c0_2, %c0_3] : memref<8x1xi32, #tpu.memory_space<vmem>>, vector<8x1xi32>
    %10 = vector.broadcast %9 : vector<8x1xi32> to vector<8x32xi32>
    %11 = arith.cmpi eq, %8, %10 : vector<8x32xi32>
    %12 = arith.extui %11 : vector<8x32xi1> to vector<8x32xi32>
    %13 = arith.sitofp %12 : vector<8x32xi32> to vector<8x32xf32>
    %14 = arith.mulf %13, %4 : vector<8x32xf32>
    %cst_4 = arith.constant dense<0.000000e+00> : vector<8xf32>
    %15 = vector.multi_reduction <add>, %14, %cst_4 [1] : vector<8x32xf32> to vector<8xf32>
    %16 = vector.shape_cast %15 : vector<8xf32> to vector<8x1xf32>
    %cst_5 = arith.constant 9.99999993E-9 : f32
    %17 = vector.broadcast %cst_5 : f32 to vector<8x1xf32>
    %18 = arith.addf %7, %17 : vector<8x1xf32>
    %19 = math.log %18 : vector<8x1xf32>
    %20 = arith.subf %19, %16 : vector<8x1xf32>
    %c8_i32 = arith.constant 8 : i32
    %21 = arith.muli %arg0, %c8_i32 : i32
    %22 = tpu.iota {dimensions = array<i32: 0>} : vector<8x1xi32>
    %23 = vector.broadcast %21 : i32 to vector<8x1xi32>
    %24 = arith.addi %23, %22 : vector<8x1xi32>
    %c8_i32_6 = arith.constant 8 : i32
    %25 = vector.broadcast %c8_i32_6 : i32 to vector<8x1xi32>
    %26 = arith.cmpi slt, %24, %25 : vector<8x1xi32>
    %cst_7 = arith.constant 0.000000e+00 : f32
    %27 = vector.broadcast %cst_7 : f32 to vector<8x1xf32>
    %28 = arith.select %26, %20, %27 : vector<8x1xi1>, vector<8x1xf32>
    %cst_8 = arith.constant dense<0.000000e+00> : vector<1xf32>
    %29 = vector.multi_reduction <add>, %28, %cst_8 [0] : vector<8x1xf32> to vector<1xf32>
    %30 = vector.shape_cast %29 : vector<1xf32> to vector<1x1xf32>
    %31 = vector.shape_cast %30 : vector<1x1xf32> to vector<1x1xf32>
    %32 = vector.broadcast %31 : vector<1x1xf32> to vector<1x128xf32>
    %c0_9 = arith.constant 0 : index
    %c0_10 = arith.constant 0 : index
    %33 = vector.load %arg3[%c0_9, %c0_10] : memref<1x128xf32, #tpu.memory_space<vmem>>, vector<1x128xf32>
    tpu.vector_store %arg3[%c0_9, %c0_10], %32 {strides = array<i32>} : memref<1x128xf32, #tpu.memory_space<vmem>>, vector<1x128xf32>,
    return
  }
  func.func @transform_0(%arg0: i32) -> (i32, i32) {
    %c0_i32 = arith.constant 0 : i32
    %c0_i32_0 = arith.constant 0 : i32
    return %arg0, %c0_i32 : i32, i32
  }
  func.func @transform_1(%arg0: i32) -> (i32, i32) {
    %c0_i32 = arith.constant 0 : i32
    %c0_i32_0 = arith.constant 0 : i32
    return %arg0, %c0_i32 : i32, i32
  }
  func.func @transform_2(%arg0: i32) -> (i32, i32) {
    %c0_i32 = arith.constant 0 : i32
    %c0_i32_0 = arith.constant 0 : i32
    return %arg0, %c0_i32 : i32, i32
  }
}

</mosaic_0001>

<llo_original>
// kernel: tpu_custom_call.1
$region0: #{tpu_custom_call.1}
  #allocation0 [shape = 'u32[]', space=smem, size = 0x4, offset = 0x4, fixed_abs, tag = 'smem constant byte address 0x4 - core index']
  #allocation1 [shape = 'u32[144,128]{1,0:T(1,128)}', space=vmem, size = 0x12000, scoped, tag = 'internal scratch']
  %s0 = inlined_call_operand.vmem [shape: f32[8,32], index: 0, kind: input, shape index: {}]
  %s1 = inlined_call_operand.vmem [shape: s32[8,1], index: 1, kind: input, shape index: {}]
  %s2 = inlined_call_operand.hbm [shape: f32[1,128], index: 2, kind: output, shape index: {}]
  %s3 = sld [smem:[#allocation0]]
  $region18: #{tpu_custom_call.1} parent=0
    _
  %s5 = ssub.s32 1, %s3
  %s6 = scalar_select 0, %s5, %s3
  $region1: #{tpu_custom_call.1} parent=0
    #allocation2 [shape = 'u8[512]{0}', space=vmem, size = 0x400, scoped, tag = 'output window, operand 0, single buffered']
    #allocation3 [shape = 's32[1]{0}', space=sflag, size = 0x4, scoped, tag = 'scoped memory for tpu_custom_call.1']
    %7 = vsyncpa [#allocation3], 0
    // Predicated region
    $region2: #{tpu_custom_call.1} parent=1 // pred_check
      _
    $region3: #{tpu_custom_call.1} parent=1 // pred_check_branch
      %9 = sbr.rel (0) target = $region5
    $region4: #{tpu_custom_call.1} parent=1 // pred_region
      _
    $region5: #{tpu_custom_call.1} parent=1 // pred_fallthru
      _
    // Predicated region
    $region6: #{tpu_custom_call.1} parent=1 // pred_check
      _
    $region7: #{tpu_custom_call.1} parent=1 // pred_check_branch
      %11 = sbr.rel (0) target = $region9
    $region8: #{tpu_custom_call.1} parent=1 // pred_region
      _
    $region9: #{tpu_custom_call.1} parent=1 // pred_fallthru
      _
    %v12 = vld [vmem:[%s0] sm:$0xff]
    %vm13 = vcmask 261120
    %v14 = vsel %vm13, %v12, -inf
    %15 = vmax.xlane.f32.xlu0 %v14
    %v16 = vpop.xlane.xlu0 %15
    %v17 = vsub.f32 %v12, %v16
    %v18 = vmul.f32 %v17, 1.442695
    %v19 = vpow.pop %v18
    %v20 = vsel %vm13, %v19, 0.0
    %21 = vadd.xlane.f32.xlu0 %v20
    %v22 = vpop.xlane.xlu0 %21
    %v23 = vlaneseq
    %v24 = vand.u32 %v23, 127
    %v25 = vld [vmem:[%s1] sm:$0xff]
    %26 = vset.pattern.permute.xlu0 0
    %27 = vperm.xlu0 %26, %v25
    %v28 = vpop.permute.xlu0 %27
    %vm29 = vcmp.eq.s32.totalorder %v24, %v28
    %v30 = vsel %vm29, 1, 0
    %v31 = vcvt.s32.f32 %v30
    %v32 = vmul.f32 %v31, %v17
    %v33 = vsel %vm13, %v32, 0.0
    %34 = vadd.xlane.f32.xlu0 %v33
    %v35 = vpop.xlane.xlu0 %34
    %v36 = vadd.f32 %v22, 1e-08
    %v37 = vlog2.pop %v36
    %v38 = vmul.f32 %v37, 0.6931472
    %v39 = vsub.f32 %v38, %v35
    %s40 = smul.u32 0, 8
    %v41 = vlaneseq
    %v42 = vshrl.u32 %v41, 7
    %v43 = vstv %s40
    %v44 = vadd.s32 %v43, %v42
    %vm45 = vcmp.lt.s32.totalorder %v44, 8
    %v46 = vsel %vm45, %v39, 0.0
    %v47 = vrot.slane %v46, 4
    %v48 = vadd.f32 %v46, %v47
    %v49 = vrot.slane %v48, 2
    %v50 = vadd.f32 %v48, %v49
    %v51 = vrot.slane %v50, 1
    %v52 = vadd.f32 %v50, %v51
    %53 = vst [vmem:[#allocation2] sm:$0x1] %v52
    // Predicated region
    $region10: #{tpu_custom_call.1} parent=1 // pred_check
      _
    $region11: #{tpu_custom_call.1} parent=1 // pred_check_branch
      %55 = sbr.rel (0) target = $region13
    $region12: #{tpu_custom_call.1} parent=1 // pred_region
      %s57 = ssub.s32 16, 16
      %58 = vsyncadd [#allocation3], %s57
      %s60 = sshll.u32 [#allocation2], 4
      %s61 = int_to_ptr.vmem [resolvable:$true] %s60
      %63 = dma.vmem_to_hbm [thread:$0]  %s61, 16, %s2, [#allocation3]
    $region13: #{tpu_custom_call.1} parent=1 // pred_fallthru
      _
    // Predicated region
    $region14: #{tpu_custom_call.1} parent=1 // pred_check
      _
    $region15: #{tpu_custom_call.1} parent=1 // pred_check_branch
      %65 = sbr.rel (0) target = $region17
    $region16: #{tpu_custom_call.1} parent=1 // pred_region
      %66 = dma.done [#allocation3], 16
    $region17: #{tpu_custom_call.1} parent=1 // pred_fallthru
      _
    %67 = vsyncpa [#allocation3], 1

</llo_original>
